<compile_context>
chip_gen: v6e
topology: v6e:2x2x1
jax: 0.10.0
libtpu: 0.0.40
codegen_flags: <defaults>
</compile_context>

<pallas_src>
import math
import functools

import jax
import jax.numpy as jnp
import numpy as np
from jax.experimental import pallas as pl
from jax.experimental.pallas import tpu as pltpu


def depth_encode_kernel(x_ref, w_ref, bias_ref, logits_ref, dr_ref):
    # x_ref:      (C, TP)        channel-major pixel tile
    # w_ref:      (3*NB, C)      fused [W_bins ; W_res ; W_res*scale] weights
    # bias_ref:   (3*NB, 128)    lane-replicated fused bias
    #                            [b_bins ; b_res ; b_res*scale + mid]
    # logits_ref: (NB, TP)       bin logits output block
    # dr_ref:     (2, TP)        row 0 = depth, row 1 = gathered residuals
    nb = logits_ref.shape[0]

    x = x_ref[...]
    w = w_ref[...]
    bias = bias_ref[:, 0:1]                # (3*NB, 1), broadcast once per tile

    # fused 1x1 convs (+ the depth-log affine) in ONE MXU matmul
    y = jnp.dot(w, x, preferred_element_type=jnp.float32) + bias   # (3*NB, TP)
    logits = y[:nb]                        # (NB, TP)
    resid = y[nb:2 * nb]                   # (NB, TP)
    z = y[2 * nb:]                         # (NB, TP) == mid + resid * scale
    logits_ref[...] = logits.astype(logits_ref.dtype)

    # first-occurrence argmax over the bin (sublane) axis -> one-hot mask
    iota = jax.lax.broadcasted_iota(jnp.int32, logits.shape, 0)
    mx = jnp.max(logits, axis=0, keepdims=True)
    idx = jnp.min(jnp.where(logits == mx, iota, nb), axis=0, keepdims=True)
    onehot = (iota == idx).astype(jnp.float32)                     # (NB, TP)

    # two one-hot sublane reductions (gathers)
    res_g = jnp.sum(onehot * resid, axis=0, keepdims=True)         # (1, TP)
    z_g = jnp.sum(onehot * z, axis=0, keepdims=True)               # (1, TP)
    depth = jnp.exp(z_g)                                           # (1, TP)

    # two direct row stores (no sublane concat)
    dr_ref[0:1, :] = depth.astype(dr_ref.dtype)
    dr_ref[1:2, :] = res_g.astype(dr_ref.dtype)


def _pick_tile_p(hw, batch, cap):
    """Largest multiple of 128 dividing HW, capped; keep >=2 steps if B==1."""
    cap = max(128, min(cap, hw))
    best = None
    for t in range(128, cap + 1, 128):
        if hw % t == 0:
            best = t
    if best is None:
        best = hw  # full-extent block is always legal
    # v7x megacore: make sure the 'parallel' grid has >= 2 steps to feed 2 TCs
    if batch == 1 and hw // best < 2:
        half = best // 2
        if half >= 128 and half % 128 == 0 and hw % half == 0:
            best = half
    return best


@functools.partial(jax.jit,
                   static_argnames=("num_bins", "tile_p_cap", "logits_dtype"))
def depth_encode_forward(x_nchw, wb, bb, wr, br, midpoints_log, bins_edges,
                         *, num_bins, tile_p_cap=16384,
                         logits_dtype=jnp.float32):
    B, C, H, W = x_nchw.shape
    HW = H * W
    tile_p = _pick_tile_p(HW, B, tile_p_cap)
    assert HW % tile_p == 0

    # free reshape: NCHW -> (B, C, HW), no transpose / extra HBM pass
    x3d = x_nchw.reshape(B, C, HW)

    # per-bin log-scale:  scale_i = log(edge_{i+1}) - log(edge_i)
    log_edges = jnp.log(bins_edges)                                # (NB + 1,)
    scale = log_edges[1:num_bins + 1] - log_edges[:num_bins]       # (NB,)

    # fused weights/bias: [bins ; residual ; residual*scale (+mid via bias)]
    w_fused = jnp.concatenate([wb, wr, wr * scale[None, :]], axis=1).T  # (3NB, C)
    bias_fused = jnp.concatenate(
        [bb, br, br * scale + midpoints_log], axis=0)              # (3NB,)
    bias_tbl = jnp.broadcast_to(bias_fused[:, None],
                                (3 * num_bins, 128)).astype(jnp.float32)

    grid = (B, HW // tile_p)
    full = lambda b, p: (0, 0)

    logits3d, dr3d = pl.pallas_call(
        depth_encode_kernel,
        out_shape=(
            jax.ShapeDtypeStruct((B, num_bins, HW), logits_dtype),
            jax.ShapeDtypeStruct((B, 2, HW), jnp.float32),
        ),
        grid_spec=pltpu.PrefetchScalarGridSpec(
            num_scalar_prefetch=0,
            grid=grid,
            in_specs=[
                pl.BlockSpec((None, C, tile_p), lambda b, p: (b, 0, p)),   # x
                pl.BlockSpec((3 * num_bins, C), full),                     # fused W
                pl.BlockSpec((3 * num_bins, 128), full),                   # bias tbl
            ],
            out_specs=[
                pl.BlockSpec((None, num_bins, tile_p), lambda b, p: (b, 0, p)),
                pl.BlockSpec((None, 2, tile_p), lambda b, p: (b, 0, p)),
            ],
        ),
        compiler_params=pltpu.CompilerParams(
            dimension_semantics=("parallel", "parallel")),
    )(x3d, w_fused, bias_tbl)

    # back to PyTorch conventions (free reshapes + two tiny slices)
    bin_logits = logits3d.reshape(B, num_bins, H, W)
    depth = dr3d[:, 0, :].reshape(B, H, W)
    residuals = dr3d[:, 1, :].reshape(B, H, W)
    return depth, bin_logits, residuals


def reference_forward(x_nchw, wb, bb, wr, br, midpoints_log, bins_edges):
    # plain-JAX reference mirroring the PyTorch forward (single=True path)
    hi = jax.lax.Precision.HIGHEST
    bin_logits = jnp.einsum('bchw,cd->bdhw', x_nchw, wb,
                            precision=hi) + bb[None, :, None, None]
    resid = jnp.einsum('bchw,cd->bdhw', x_nchw, wr,
                       precision=hi) + br[None, :, None, None]
    idx = jnp.argmax(bin_logits, axis=1)                        # (B, H, W)
    mid = midpoints_log[idx]
    log_l = jnp.log(bins_edges[idx])
    log_r = jnp.log(bins_edges[idx + 1])
    res_g = jnp.take_along_axis(resid, idx[:, None], axis=1)[:, 0]
    depth = jnp.exp(mid + res_g * (log_r - log_l))
    return depth, bin_logits, res_g


if __name__ == "__main__":
    # module hyperparameters (small, consistent with DepthEncode.__init__)
    inC = 16
    num_bins = 8
    min_depth = 2.0   # alpha
    max_depth = 60.0  # beta

    # geometric bin edges and log-midpoints, exactly as in __init__
    bins_edges_list = [
        math.exp(math.log(min_depth) + math.log(max_depth / min_depth) * i / num_bins)
        for i in range(num_bins + 1)
    ]
    midpoints_log_list = [
        (math.log(bins_edges_list[i + 1]) + math.log(bins_edges_list[i])) / 2
        for i in range(num_bins)
    ]
    bins_edges = jnp.asarray(bins_edges_list, dtype=jnp.float32)
    midpoints_log = jnp.asarray(midpoints_log_list, dtype=jnp.float32)

    # deterministic parameter init (Conv2d 1x1 ~ kaiming-uniform style bound)
    key = jax.random.PRNGKey(0)
    kx, kwb, kbb, kwr, kbr = jax.random.split(key, 5)
    bound = 1.0 / math.sqrt(inC)
    wb = jax.random.uniform(kwb, (inC, num_bins), jnp.float32, -bound, bound)
    bb = jax.random.uniform(kbb, (num_bins,), jnp.float32, -bound, bound)
    wr = jax.random.uniform(kwr, (inC, num_bins), jnp.float32, -bound, bound)
    br = jax.random.uniform(kbr, (num_bins,), jnp.float32, -bound, bound)

    # input: NCHW, B=2, C=inC, H=W=16  -> HW = 256 pixels per image
    x = jax.random.normal(kx, (2, inC, 16, 16), dtype=jnp.float32)

    depth, bin_logits, residuals = depth_encode_forward(
        x, wb, bb, wr, br, midpoints_log, bins_edges, num_bins=num_bins)
    jax.block_until_ready((depth, bin_logits, residuals))

    # correctness check against plain-JAX reference
    d_ref, l_ref, r_ref = reference_forward(
        x, wb, bb, wr, br, midpoints_log, bins_edges)
    np.testing.assert_allclose(np.asarray(bin_logits), np.asarray(l_ref),
                               rtol=1e-4, atol=1e-4)
    np.testing.assert_allclose(np.asarray(depth), np.asarray(d_ref),
                               rtol=1e-4, atol=1e-4)
    np.testing.assert_allclose(np.asarray(residuals), np.asarray(r_ref),
                               rtol=1e-4, atol=1e-4)

    print("KERNEL_OK")
</pallas_src>

<mosaic_0001>
module attributes {stable_mosaic.version = 11 : i64} {
  func.func @depth_encode_kernel(%arg0: i32, %arg1: i32, %arg2: memref<1x16x256xf32, #tpu.memory_space<vmem>>, %arg3: memref<24x16xf32, #tpu.memory_space<vmem>>, %arg4: memref<24x128xf32, #tpu.memory_space<vmem>>, %arg5: memref<1x8x256xf32, #tpu.memory_space<vmem>>, %arg6: memref<1x2x256xf32, #tpu.memory_space<vmem>>) attributes {dimension_semantics = [#tpu.dimension_semantics<parallel>, #tpu.dimension_semantics<parallel>], iteration_bounds = array<i64: 2, 1>, scalar_prefetch = 0 : i64, scratch_operands = 0 : i64, tpu.core_type = #tpu.core_type<tc>, window_params = [{transform_indices = @transform_0, window_bounds = array<i64: 1, 16, 256>}, {pipeline_mode = #tpu.pipeline_mode<synchronous>, transform_indices = @transform_1, window_bounds = array<i64: 24, 16>}, {pipeline_mode = #tpu.pipeline_mode<synchronous>, transform_indices = @transform_2, window_bounds = array<i64: 24, 128>}, {transform_indices = @transform_3, window_bounds = array<i64: 1, 8, 256>}, {transform_indices = @transform_4, window_bounds = array<i64: 1, 2, 256>}]} {
    %c0 = arith.constant 0 : index
    %c0_0 = arith.constant 0 : index
    %c0_1 = arith.constant 0 : index
    %0 = vector.load %arg2[%c0, %c0_0, %c0_1] : memref<1x16x256xf32, #tpu.memory_space<vmem>>, vector<1x16x256xf32>
    %1 = vector.shape_cast %0 : vector<1x16x256xf32> to vector<16x256xf32>
    %c0_2 = arith.constant 0 : index
    %c0_3 = arith.constant 0 : index
    %2 = vector.load %arg3[%c0_2, %c0_3] : memref<24x16xf32, #tpu.memory_space<vmem>>, vector<24x16xf32>
    %c0_4 = arith.constant 0 : index
    %c0_5 = arith.constant 0 : index
    %3 = vector.load %arg4[%c0_4, %c0_5] : memref<24x128xf32, #tpu.memory_space<vmem>>, vector<24x1xf32>
    %cst = arith.constant dense<0.000000e+00> : vector<24x256xf32>
    %4 = tpu.matmul %2, %1, %cst {dimension_numbers = #tpu.dot_dimension_numbers<[1], [0], [0], [1], [0, 0, 1, 1], [], []>} : vector<24x16xf32>, vector<16x256xf32>, vector<24x256xf32> -> vector<24x256xf32>
    %5 = vector.broadcast %3 : vector<24x1xf32> to vector<24x256xf32>
    %6 = arith.addf %4, %5 : vector<24x256xf32>
    %7 = vector.extract_strided_slice %6 {offsets = [0, 0], sizes = [8, 256], strides = [1, 1]} : vector<24x256xf32> to vector<8x256xf32>
    %8 = vector.extract_strided_slice %6 {offsets = [8, 0], sizes = [8, 256], strides = [1, 1]} : vector<24x256xf32> to vector<8x256xf32>
    %9 = vector.extract_strided_slice %6 {offsets = [16, 0], sizes = [8, 256], strides = [1, 1]} : vector<24x256xf32> to vector<8x256xf32>
    %c0_6 = arith.constant 0 : index
    %c0_7 = arith.constant 0 : index
    %c0_8 = arith.constant 0 : index
    %10 = vector.load %arg5[%c0_6, %c0_7, %c0_8] : memref<1x8x256xf32, #tpu.memory_space<vmem>>, vector<1x8x256xf32>
    %11 = vector.shape_cast %10 : vector<1x8x256xf32> to vector<8x256xf32>
    %12 = vector.shape_cast %7 : vector<8x256xf32> to vector<1x8x256xf32>
    tpu.vector_store %arg5[%c0_6, %c0_7, %c0_8], %12 {strides = array<i32>} : memref<1x8x256xf32, #tpu.memory_space<vmem>>, vector<1x8x256xf32>,
    %13 = tpu.iota {dimensions = array<i32: 0>} : vector<8x256xi32>
    %cst_9 = arith.constant dense<0xFF800000> : vector<256xf32>
    %14 = vector.multi_reduction <maximumf>, %7, %cst_9 [0] : vector<8x256xf32> to vector<256xf32>
    %15 = vector.shape_cast %14 : vector<256xf32> to vector<1x256xf32>
    %16 = vector.broadcast %15 : vector<1x256xf32> to vector<8x256xf32>
    %17 = arith.cmpf oeq, %7, %16 : vector<8x256xf32>
    %c8_i32 = arith.constant 8 : i32
    %18 = vector.broadcast %c8_i32 : i32 to vector<8x256xi32>
    %19 = arith.select %17, %13, %18 : vector<8x256xi1>, vector<8x256xi32>
    %cst_10 = arith.constant dense<2147483647> : vector<256xi32>
    %20 = vector.multi_reduction <minsi>, %19, %cst_10 [0] : vector<8x256xi32> to vector<256xi32>
    %21 = vector.shape_cast %20 : vector<256xi32> to vector<1x256xi32>
    %22 = vector.broadcast %21 : vector<1x256xi32> to vector<8x256xi32>
    %23 = arith.cmpi eq, %13, %22 : vector<8x256xi32>
    %24 = arith.extui %23 : vector<8x256xi1> to vector<8x256xi32>
    %25 = arith.sitofp %24 : vector<8x256xi32> to vector<8x256xf32>
    %26 = arith.mulf %25, %8 : vector<8x256xf32>
    %cst_11 = arith.constant dense<0.000000e+00> : vector<256xf32>
    %27 = vector.multi_reduction <add>, %26, %cst_11 [0] : vector<8x256xf32> to vector<256xf32>
    %28 = vector.shape_cast %27 : vector<256xf32> to vector<1x256xf32>
    %29 = arith.mulf %25, %9 : vector<8x256xf32>
    %cst_12 = arith.constant dense<0.000000e+00> : vector<256xf32>
    %30 = vector.multi_reduction <add>, %29, %cst_12 [0] : vector<8x256xf32> to vector<256xf32>
    %31 = vector.shape_cast %30 : vector<256xf32> to vector<1x256xf32>
    %32 = math.exp %31 : vector<1x256xf32>
    %c0_13 = arith.constant 0 : index
    %c0_14 = arith.constant 0 : index
    %c0_15 = arith.constant 0 : index
    %33 = vector.load %arg6[%c0_13, %c0_14, %c0_15] : memref<1x2x256xf32, #tpu.memory_space<vmem>>, vector<1x1x256xf32>
    %34 = vector.shape_cast %33 : vector<1x1x256xf32> to vector<1x256xf32>
    %35 = vector.shape_cast %32 : vector<1x256xf32> to vector<1x1x256xf32>
    tpu.vector_store %arg6[%c0_13, %c0_14, %c0_15], %35 {strides = array<i32>} : memref<1x2x256xf32, #tpu.memory_space<vmem>>, vector<1x1x256xf32>,
    %c0_16 = arith.constant 0 : index
    %c1 = arith.constant 1 : index
    %c0_17 = arith.constant 0 : index
    %36 = vector.load %arg6[%c0_16, %c1, %c0_17] : memref<1x2x256xf32, #tpu.memory_space<vmem>>, vector<1x1x256xf32>
    %37 = vector.shape_cast %36 : vector<1x1x256xf32> to vector<1x256xf32>
    %38 = vector.shape_cast %28 : vector<1x256xf32> to vector<1x1x256xf32>
    tpu.vector_store %arg6[%c0_16, %c1, %c0_17], %38 {strides = array<i32>} : memref<1x2x256xf32, #tpu.memory_space<vmem>>, vector<1x1x256xf32>,
    return
  }
  func.func @transform_0(%arg0: i32, %arg1: i32) -> (i32, i32, i32) {
    %c0_i32 = arith.constant 0 : i32
    %c0_i32_0 = arith.constant 0 : i32
    return %arg0, %c0_i32, %arg1 : i32, i32, i32
  }
  func.func @transform_1(%arg0: i32, %arg1: i32) -> (i32, i32) {
    %c0_i32 = arith.constant 0 : i32
    %c0_i32_0 = arith.constant 0 : i32
    %c0_i32_1 = arith.constant 0 : i32
    return %c0_i32, %c0_i32_0 : i32, i32
  }
  func.func @transform_2(%arg0: i32, %arg1: i32) -> (i32, i32) {
    %c0_i32 = arith.constant 0 : i32
    %c0_i32_0 = arith.constant 0 : i32
    %c0_i32_1 = arith.constant 0 : i32
    return %c0_i32, %c0_i32_0 : i32, i32
  }
  func.func @transform_3(%arg0: i32, %arg1: i32) -> (i32, i32, i32) {
    %c0_i32 = arith.constant 0 : i32
    %c0_i32_0 = arith.constant 0 : i32
    return %arg0, %c0_i32, %arg1 : i32, i32, i32
  }
  func.func @transform_4(%arg0: i32, %arg1: i32) -> (i32, i32, i32) {
    %c0_i32 = arith.constant 0 : i32
    %c0_i32_0 = arith.constant 0 : i32
    return %arg0, %c0_i32, %arg1 : i32, i32, i32
  }
}

</mosaic_0001>

<llo_original>
// kernel: squeeze.2
$region0: #{squeeze.2}
  %s0 = inlined_call_operand.vmem [shape: f32[2,256], index: 0, kind: input, shape index: {}]
  %s1 = inlined_call_operand.hbm [shape: f32[2,16,16], index: 1, kind: output, shape index: {}]
  $region1: #{squeeze.2} parent=0
    #allocation0 [shape = 'u8[16384]{0}', space=vmem, size = 0x4000, scoped, tag = 'operand span for operand 1']
    #allocation1 [shape = 's32[1]{0}', space=sflag, size = 0x4, scoped, tag = 'scoped memory for squeeze.2']
    #allocation2 [shape = 'u8[8192]{0}', space=vmem, size = 0x2000, scoped, tag = 'scoped mem for input reshape']
    %2 = vsyncpa [#allocation1], 0
    %s4 = sshll.u32 1, 2
    %s5 = ssub.s32 %s4, 1
    %s6 = scalar_lea.vmem %s0, 2
    %v7 = vld [vmem:[%s6] sm:%s5]
    %s8 = scalar_lea.vmem [#allocation2], 8
    %9 = vst [vmem:[%s8] sm:%s5] %v7
    %v10 = vld [vmem:[%s0] sm:%s5]
    %11 = vst [vmem:[#allocation2] sm:%s5] %v10
    %v12 = vld [vmem:[#allocation2] sm:$0x3]
    %vm13 = vcmask 130048
    %14 = vst.msk [vmem:[#allocation0] ss:$16 sm:$0x3] %vm13, %v12
    %s15 = scalar_lea.vmem [#allocation2], 8
    %v16 = vld [vmem:[%s15] sm:$0x3]
    %vm17 = vcmask 130048
    %s18 = scalar_lea.vmem [#allocation0], 8
    %19 = vst.msk [vmem:[%s18] ss:$16 sm:$0x3] %vm17, %v16
    %v20 = vld.sshfl [vmem:[#allocation2] sm:$0xff pattern:$0x99999180]
    %21 = vrot.lane.b32.xlu0 %v20, 112
    %v22 = vpop.permute.xlu0 %21
    %vm23 = vcmask 130048
    %s24 = scalar_lea.vmem [#allocation0], 1
    %25 = vst.msk [vmem:[%s24] ss:$8 sm:$0xf] %vm23, %v22
    %v26 = vld.sshfl [vmem:[#allocation2] sm:$0xff pattern:$0x99999180]
    %27 = vrot.lane.b32.xlu0 %v26, 96
    %v28 = vpop.permute.xlu0 %27
    %vm29 = vcmask 130048
    %s30 = scalar_lea.vmem [#allocation0], 2
    %31 = vst.msk [vmem:[%s30] ss:$8 sm:$0xf] %vm29, %v28
    %v32 = vld.sshfl [vmem:[#allocation2] sm:$0xff pattern:$0x99999180]
    %33 = vrot.lane.b32.xlu0 %v32, 80
    %v34 = vpop.permute.xlu0 %33
    %vm35 = vcmask 130048
    %s36 = scalar_lea.vmem [#allocation0], 3
    %37 = vst.msk [vmem:[%s36] ss:$8 sm:$0xf] %vm35, %v34
    %v38 = vld.sshfl [vmem:[#allocation2] sm:$0xff pattern:$0x99999180]
    %39 = vrot.lane.b32.xlu0 %v38, 64
    %v40 = vpop.permute.xlu0 %39
    %vm41 = vcmask 130048
    %s42 = scalar_lea.vmem [#allocation0], 4
    %43 = vst.msk [vmem:[%s42] ss:$8 sm:$0xf] %vm41, %v40
    %v44 = vld.sshfl [vmem:[#allocation2] sm:$0xff pattern:$0x99999180]
    %45 = vrot.lane.b32.xlu0 %v44, 48
    %v46 = vpop.permute.xlu0 %45
    %vm47 = vcmask 130048
    %s48 = scalar_lea.vmem [#allocation0], 5
    %49 = vst.msk [vmem:[%s48] ss:$8 sm:$0xf] %vm47, %v46
    %v50 = vld.sshfl [vmem:[#allocation2] sm:$0xff pattern:$0x99999180]
    %51 = vrot.lane.b32.xlu0 %v50, 32
    %v52 = vpop.permute.xlu0 %51
    %vm53 = vcmask 130048
    %s54 = scalar_lea.vmem [#allocation0], 6
    %55 = vst.msk [vmem:[%s54] ss:$8 sm:$0xf] %vm53, %v52
    %v56 = vld.sshfl [vmem:[#allocation2] sm:$0xff pattern:$0x99999180]
    %57 = vrot.lane.b32.xlu0 %v56, 16
    %v58 = vpop.permute.xlu0 %57
    %vm59 = vcmask 130048
    %s60 = scalar_lea.vmem [#allocation0], 7
    %61 = vst.msk [vmem:[%s60] ss:$8 sm:$0xf] %vm59, %v58
    %s63 = ssub.s32 512, 512
    %64 = vsyncadd [#allocation1], %s63
    %s66 = sshll.u32 [#allocation0], 4
    %s67 = int_to_ptr.vmem [resolvable:$true] %s66
    %69 = dma.vmem_to_hbm [thread:$0]  %s67, 512, %s1, [#allocation1]
    %70 = dma.done [#allocation1], 512
    %71 = vsyncpa [#allocation1], 1

// kernel: depth_encode_forward.1
$region0: #{depth_encode_forward.1}
  #allocation0 [shape = 'u32[]', space=smem, size = 0x4, offset = 0x4, fixed_abs, tag = 'smem constant byte address 0x4 - core index']
  #allocation1 [shape = 'u32[144,128]{1,0:T(1,128)}', space=vmem, size = 0x12000, scoped, tag = 'internal scratch']
  %s0 = inlined_call_operand.vmem [shape: f32[2,16,256], index: 0, kind: input, shape index: {}]
  %s1 = inlined_call_operand.vmem [shape: f32[24,16], index: 1, kind: input, shape index: {}]
  %s2 = inlined_call_operand.vmem [shape: f32[24,128], index: 2, kind: input, shape index: {}]
  %s3 = inlined_call_operand.vmem [shape: f32[2,8,256], index: 3, kind: output, shape index: {0}]
  %s4 = inlined_call_operand.vmem [shape: f32[2,2,256], index: 4, kind: output, shape index: {1}]
  %5 = xla_tuple %s3, %s4
  %s6 = sld [smem:[#allocation0]]
  $region53: #{depth_encode_forward.1} parent=0
    _
  %s8 = ssub.s32 1, %s6
  %s9 = scalar_select 0, %s8, %s6
  loop: start=0, step=1, limit=4
  $region2: #{depth_encode_forward.1} parent=0 // loop_pre_header
    _
  $region3: #{depth_encode_forward.1} parent=0 // loop_header
    %s11 = sphi 0, %s15
    %p12 = scmp.ge.s32.totalorder %s11, 4
    %s18 = sphi 0, %s30
    %s19 = sphi 0, %s26
    %s20 = sphi 0, %s18
    %s21 = sphi 0, %s19
    %s22 = sphi 0, %s20
    %s23 = sphi 0, %s21
    %s35 = sphi 0, %s37
    %s38 = sphi 0, %s35
    %s39 = sphi 0, %s38
    %s55 = sphi 0, %s39
    %s59 = sphi 0, %s59
    %s61 = sphi 0, %s59
    %s62 = sphi 0, %s61
    %s76 = sphi 0, %s62
    %s80 = sphi 0, %s80
    %s82 = sphi 0, %s80
    %s83 = sphi 0, %s82
    %s97 = sphi 0, %s83
    %s105 = sphi 0, %s107
    %s108 = sphi 0, %s105
    %s109 = sphi 0, %s108
    %s125 = sphi 0, %s109
    %s133 = sphi 0, %s135
    %s136 = sphi 0, %s133
    %s137 = sphi 0, %s136
    %s153 = sphi 0, %s137
  $region4: #{depth_encode_forward.1} parent=0 // loop_header_branch
    %14 = sbr.rel (%p12) target = $region8
  $region5: #{depth_encode_forward.1} parent=0 // loop_body
    %s16 = ssub.s32 %s11, 1
    %s17 = ssub.s32 %s11, 2
    %s24 = sadd.s32 1, %s19
    %p25 = scmp.ge.s32.totalorder %s24, 1
    %s26 = scalar_select %p25, 0, %s24
    %s27 = sadd.s32 1, %s18
    %s28 = scalar_select %p25, %s27, %s18
    %p29 = scmp.ge.s32.totalorder %s28, 2
    %s30 = scalar_select %p29, 0, %s28
    %s31 = ssub.s32 %s18, %s30
    %s32 = ssub.s32 %s19, %s26
    %s33 = sor.u32 %s31, %s32
    %p34 = scmp.eq.s32.totalorder %s33, 0
    %s36 = sadd.s32 %s35, 1
    %s37 = scalar_select %p34, %s35, %s36
    %p40 = pneg %p34
    %p41 = scmp.eq.s32.totalorder %s11, 1
    %p42 = por %p40, %p41
    %p43 = scmp.ne.s32.totalorder %s35, %s38
    %p44 = scmp.eq.s32.totalorder %s11, 0
    %p45 = por %p43, %p44
    %p46 = scmp.ne.s32.totalorder %s35, %s38
    %p47 = scmp.eq.s32.totalorder %s16, 1
    %p48 = por %p46, %p47
    %p49 = scmp.ne.s32.totalorder %s38, %s39
    %p50 = scmp.eq.s32.totalorder %s16, 0
    %p51 = por %p49, %p50
    %p52 = scmp.ne.s32.totalorder %s38, %s39
    %p53 = scmp.eq.s32.totalorder %s17, 1
    %p54 = por %p52, %p53
    %p56 = scmp.ne.s32.totalorder %s39, %s55
    %p57 = scmp.eq.s32.totalorder %s17, 0
    %p58 = por %p56, %p57
    %s60 = sadd.s32 %s59, 1
    %p63 = scmp.eq.s32.totalorder %s11, 1
    %p64 = scmp.ne.s32.totalorder %s59, %s61
    %p65 = scmp.eq.s32.totalorder %s11, 0
    %p66 = por %p64, %p65
    %p67 = scmp.ne.s32.totalorder %s59, %s61
    %p68 = scmp.eq.s32.totalorder %s16, 1
    %p69 = por %p67, %p68
    %p70 = scmp.ne.s32.totalorder %s61, %s62
    %p71 = scmp.eq.s32.totalorder %s16, 0
    %p72 = por %p70, %p71
    %p73 = scmp.ne.s32.totalorder %s61, %s62
    %p74 = scmp.eq.s32.totalorder %s17, 1
    %p75 = por %p73, %p74
    %p77 = scmp.ne.s32.totalorder %s62, %s76
    %p78 = scmp.eq.s32.totalorder %s17, 0
    %p79 = por %p77, %p78
    %s81 = sadd.s32 %s80, 1
    %p84 = scmp.eq.s32.totalorder %s11, 1
    %p85 = scmp.ne.s32.totalorder %s80, %s82
    %p86 = scmp.eq.s32.totalorder %s11, 0
    %p87 = por %p85, %p86
    %p88 = scmp.ne.s32.totalorder %s80, %s82
    %p89 = scmp.eq.s32.totalorder %s16, 1
    %p90 = por %p88, %p89
    %p91 = scmp.ne.s32.totalorder %s82, %s83
    %p92 = scmp.eq.s32.totalorder %s16, 0
    %p93 = por %p91, %p92
    %p94 = scmp.ne.s32.totalorder %s82, %s83
    %p95 = scmp.eq.s32.totalorder %s17, 1
    %p96 = por %p94, %p95
    %p98 = scmp.ne.s32.totalorder %s83, %s97
    %p99 = scmp.eq.s32.totalorder %s17, 0
    %p100 = por %p98, %p99
    %s101 = ssub.s32 %s18, %s30
    %s102 = ssub.s32 %s19, %s26
    %s103 = sor.u32 %s101, %s102
    %p104 = scmp.eq.s32.totalorder %s103, 0
    %s106 = sadd.s32 %s105, 1
    %s107 = scalar_select %p104, %s105, %s106
    %p110 = pneg %p104
    %p111 = scmp.eq.s32.totalorder %s11, 1
    %p112 = por %p110, %p111
    %p113 = scmp.ne.s32.totalorder %s105, %s108
    %p114 = scmp.eq.s32.totalorder %s11, 0
    %p115 = por %p113, %p114
    %p116 = scmp.ne.s32.totalorder %s105, %s108
    %p117 = scmp.eq.s32.totalorder %s16, 1
    %p118 = por %p116, %p117
    %p119 = scmp.ne.s32.totalorder %s108, %s109
    %p120 = scmp.eq.s32.totalorder %s16, 0
    %p121 = por %p119, %p120
    %p122 = scmp.ne.s32.totalorder %s108, %s109
    %p123 = scmp.eq.s32.totalorder %s17, 1
    %p124 = por %p122, %p123
    %p126 = scmp.ne.s32.totalorder %s109, %s125
    %p127 = scmp.eq.s32.totalorder %s17, 0
    %p128 = por %p126, %p127
    %s129 = ssub.s32 %s18, %s30
    %s130 = ssub.s32 %s19, %s26
    %s131 = sor.u32 %s129, %s130
    %p132 = scmp.eq.s32.totalorder %s131, 0
    %s134 = sadd.s32 %s133, 1
    %s135 = scalar_select %p132, %s133, %s134
    %p138 = pneg %p132
    %p139 = scmp.eq.s32.totalorder %s11, 1
    %p140 = por %p138, %p139
    %p141 = scmp.ne.s32.totalorder %s133, %s136
    %p142 = scmp.eq.s32.totalorder %s11, 0
    %p143 = por %p141, %p142
    %p144 = scmp.ne.s32.totalorder %s133, %s136
    %p145 = scmp.eq.s32.totalorder %s16, 1
    %p146 = por %p144, %p145
    %p147 = scmp.ne.s32.totalorder %s136, %s137
    %p148 = scmp.eq.s32.totalorder %s16, 0
    %p149 = por %p147, %p148
    %p150 = scmp.ne.s32.totalorder %s136, %s137
    %p151 = scmp.eq.s32.totalorder %s17, 1
    %p152 = por %p150, %p151
    %p154 = scmp.ne.s32.totalorder %s137, %s153
    %p155 = scmp.eq.s32.totalorder %s17, 0
    %p156 = por %p154, %p155
    %p157 = scmp.le.s32.totalorder 1, %s11
    %p158 = scmp.lt.s32.totalorder %s11, 3
    %p159 = pnand %p157, %p158
    %p160 = pneg %p159
    // Predicated region
    $region9: #{depth_encode_forward.1} parent=5 // pred_check
      _
    $region10: #{depth_encode_forward.1} parent=5 // pred_check_branch
      %162 = sbr.rel (%p159) target = $region12
    $region11: #{depth_encode_forward.1} parent=5 // pred_region
      %s163 = ssub.s32 %s11, 1
      // Predicated region
      $region13: #{depth_encode_forward.1} parent=11 // pred_check
        %p164 = pneg %p72
      $region14: #{depth_encode_forward.1} parent=11 // pred_check_branch
        %166 = sbr.rel (%p164) target = $region16
      $region15: #{depth_encode_forward.1} parent=11 // pred_region
        _
      $region16: #{depth_encode_forward.1} parent=11 // pred_fallthru
        _
      // Predicated region
      $region17: #{depth_encode_forward.1} parent=11 // pred_check
        %p167 = pneg %p93
      $region18: #{depth_encode_forward.1} parent=11 // pred_check_branch
        %169 = sbr.rel (%p167) target = $region20
      $region19: #{depth_encode_forward.1} parent=11 // pred_region
        _
      $region20: #{depth_encode_forward.1} parent=11 // pred_fallthru
        _
    $region12: #{depth_encode_forward.1} parent=5 // pred_fallthru
      _
    %p170 = scmp.lt.s32.totalorder %s11, 2
    // Predicated region
    $region21: #{depth_encode_forward.1} parent=5 // pred_check
      %p171 = pneg %p170
    $region22: #{depth_encode_forward.1} parent=5 // pred_check_branch
      %173 = sbr.rel (%p171) target = $region24
    $region23: #{depth_encode_forward.1} parent=5 // pred_region
      // Predicated region
      $region25: #{depth_encode_forward.1} parent=23 // pred_check
        %p174 = pneg %p45
      $region26: #{depth_encode_forward.1} parent=23 // pred_check_branch
        %176 = sbr.rel (%p174) target = $region28
      $region27: #{depth_encode_forward.1} parent=23 // pred_region
        %s177 = smul.u32 2, %s19
        %p178 = scmp.lt.s32.totalorder %s18, 1
        %s179 = scalar_select %p178, %s18, 1
        %p180 = scmp.lt.s32.totalorder %s177, 1
        %s181 = scalar_select %p180, %s177, 1
        %s182 = smul.addr %s179, 4
        %s183 = sadd.s32 %s181, %s182
        %s184 = smul.addr %s183, 8
        %s185 = scalar_lea.vmem %s0, %s184
        %s186 = smul.u32 2, %s19
      $region28: #{depth_encode_forward.1} parent=23 // pred_fallthru
        _
    $region24: #{depth_encode_forward.1} parent=5 // pred_fallthru
      _
    %p187 = scmp.le.s32.totalorder 1, %s11
    %p188 = scmp.lt.s32.totalorder %s11, 3
    %p189 = pnand %p187, %p188
    %p190 = pneg %p189
    // Predicated region
    $region29: #{depth_encode_forward.1} parent=5 // pred_check
      _
    $region30: #{depth_encode_forward.1} parent=5 // pred_check_branch
      %192 = sbr.rel (%p189) target = $region32
    $region31: #{depth_encode_forward.1} parent=5 // pred_region
      %s193 = ssub.s32 %s11, 1
      %s194 = smul.u32 2, %s21
      %p195 = scmp.lt.s32.totalorder %s20, 1
      %s196 = scalar_select %p195, %s20, 1
      %p197 = scmp.lt.s32.totalorder %s194, 1
      %s198 = scalar_select %p197, %s194, 1
      %s199 = smul.addr %s196, 4
      %s200 = sadd.s32 %s198, %s199
      %s201 = smul.addr %s200, 8
      %s202 = scalar_lea.vmem %s0, %s201
      %p203 = pneg %p51
      %p204 = pneg %p48
      %p205 = pneg %p72
      %p206 = pneg %p69
      %p207 = pneg %p93
      %p208 = pneg %p90
      %p209 = pneg %p121
      %p210 = pneg %p118
      %s211 = smul.u32 2, %s21
      %p212 = scmp.lt.s32.totalorder %s20, 1
      %s213 = scalar_select %p212, %s20, 1
      %p214 = scmp.lt.s32.totalorder %s211, 1
      %s215 = scalar_select %p214, %s211, 1
      %s216 = smul.addr %s213, 2
      %s217 = sadd.s32 %s215, %s216
      %s218 = smul.addr %s217, 8
      %s219 = scalar_lea.vmem %s3, %s218
      %p220 = pneg %p149
      %p221 = pneg %p146
      %s222 = smul.u32 2, %s21
      %p223 = scmp.lt.s32.totalorder %s20, 1
      %s224 = scalar_select %p223, %s20, 1
      %p225 = scmp.lt.s32.totalorder %s222, 1
      %s226 = scalar_select %p225, %s222, 1
      %s227 = smul.addr %s224, 2
      %s228 = sadd.s32 %s226, %s227
      %s229 = smul.addr %s228, 2
      %s230 = scalar_lea.vmem %s4, %s229
      %s231 = smul.u32 2, %s21
      %p232 = scmp.lt.s32.totalorder %s20, 1
      %s233 = scalar_select %p232, %s20, 1
      %p234 = scmp.lt.s32.totalorder %s231, 1
      %s235 = scalar_select %p234, %s231, 1
      %s236 = smul.addr %s233, 4
      %s237 = sadd.s32 %s235, %s236
      %s238 = smul.addr %s237, 8
      %s239 = scalar_lea.vmem %s0, %s238
      %s240 = smul.u32 2, %s21
      %s241 = smul.u32 2, %s21
      %p242 = scmp.lt.s32.totalorder %s20, 1
      %s243 = scalar_select %p242, %s20, 1
      %p244 = scmp.lt.s32.totalorder %s241, 1
      %s245 = scalar_select %p244, %s241, 1
      %s246 = smul.addr %s243, 2
      %s247 = sadd.s32 %s245, %s246
      %s248 = smul.addr %s247, 8
      %s249 = scalar_lea.vmem %s3, %s248
      %s250 = smul.u32 2, %s21
      %s251 = smul.u32 2, %s21
      %p252 = scmp.lt.s32.totalorder %s20, 1
      %s253 = scalar_select %p252, %s20, 1
      %p254 = scmp.lt.s32.totalorder %s251, 1
      %s255 = scalar_select %p254, %s251, 1
      %s256 = smul.addr %s253, 2
      %s257 = sadd.s32 %s255, %s256
      %s258 = smul.addr %s257, 2
      %s259 = scalar_lea.vmem %s4, %s258
      %s260 = smul.u32 2, %s21
      %v261 = vld [vmem:[%s239] sm:$0xff]
      %v262 = vld [vmem:[%s239 + $0x8] sm:$0xff]
      %v263 = vld [vmem:[%s239 + $0x10] sm:$0xff]
      %v264 = vld [vmem:[%s239 + $0x18] sm:$0xff]
      %v265 = vld [vmem:[%s1] sm:$0xff]
      %v266 = vld [vmem:[%s1 + $0x8] sm:$0xff]
      %v267 = vld [vmem:[%s1 + $0x10] sm:$0xff]
      %v268 = vld [vmem:[%s2] sm:$0xff]
      %v269 = vld [vmem:[%s2 + $0x8] sm:$0xff]
      %v270 = vld [vmem:[%s2 + $0x10] sm:$0xff]
      %272 = vset.pattern.permute.xlu0 0
      %273 = vperm.xlu0 %272, %v268
      %v274 = vpop.permute.xlu0 %273
      %277 = vset.pattern.permute.xlu0 0
      %278 = vperm.xlu0 %277, %v269
      %v279 = vpop.permute.xlu0 %278
      %282 = vset.pattern.permute.xlu0 0
      %283 = vperm.xlu0 %282, %v270
      %v284 = vpop.permute.xlu0 %283
      %vm286 = vcmask 130048
      %v288 = vsel %vm286, %v265, 0
      %v291 = vsel %vm286, %v266, 0
      %v294 = vsel %vm286, %v267, 0
      %296 = vmatprep.subr.mxu0 0.0
      %297 = vmatpush1.msra.mxu0 0.0
      %298 = vmatprep.subr.mxu0 0.0
      %299 = vmatpush1.msra.mxu0 0.0
      %300 = vmatprep.subr.mxu0 0.0
      %301 = vmatpush1.msra.mxu0 0.0
      %302 = vmatprep.subr.mxu0 0.0
      %303 = vmatpush1.msra.mxu0 0.0
      %304 = vmatprep.subr.mxu0 0.0
      %305 = vmatpush1.msra.mxu0 0.0
      %306 = vmatprep.subr.mxu0 0.0
      %307 = vmatpush1.msra.mxu0 0.0
      %308 = vmatprep.subr.mxu0 0.0
      %309 = vmatpush1.msra.mxu0 0.0
      %310 = vmatprep.subr.mxu0 0.0
      %311 = vmatpush1.msra.mxu0 0.0
      %312 = vmatprep.subr.mxu0 0.0
      %313 = vmatpush1.msra.mxu0 0.0
      %314 = vmatprep.subr.mxu0 0.0
      %315 = vmatpush1.msra.mxu0 0.0
      %316 = vmatprep.subr.mxu0 0.0
      %317 = vmatpush1.msra.mxu0 0.0
      %318 = vmatprep.subr.mxu0 0.0
      %319 = vmatpush1.msra.mxu0 0.0
      %320 = vmatprep.subr.mxu0 0.0
      %321 = vmatpush1.msra.mxu0 0.0
      %322 = vmatprep.subr.mxu0 0.0
      %323 = vmatpush1.msra.mxu0 0.0
      %324 = vmatprep.subr.mxu0 %v264
      %325 = vmatpush1.msra.mxu0 %v263
      %326 = vmatprep.subr.mxu0 %v262
      %327 = vmatpush1.msra.mxu0 %v261
      %328 = vmatprep.subr.mxu0 0.0
      %329 = vmatpush2.msra.mxu0 0.0
      %330 = vmatprep.subr.mxu0 0.0
      %331 = vmatpush2.msra.mxu0 0.0
      %332 = vmatprep.subr.mxu0 0.0
      %333 = vmatpush2.msra.mxu0 0.0
      %334 = vmatprep.subr.mxu0 0.0
      %335 = vmatpush2.msra.mxu0 0.0
      %336 = vmatprep.subr.mxu0 0.0
      %337 = vmatpush2.msra.mxu0 0.0
      %338 = vmatprep.subr.mxu0 0.0
      %339 = vmatpush2.msra.mxu0 0.0
      %340 = vmatprep.subr.mxu0 0.0
      %341 = vmatpush2.msra.mxu0 0.0
      %342 = vmatprep.subr.mxu0 0.0
      %343 = vmatpush2.msra.mxu0 0.0
      %344 = vmatprep.subr.mxu0 0.0
      %345 = vmatpush2.msra.mxu0 0.0
      %346 = vmatprep.subr.mxu0 0.0
      %347 = vmatpush2.msra.mxu0 0.0
      %348 = vmatprep.subr.mxu0 0.0
      %349 = vmatpush2.msra.mxu0 0.0
      %350 = vmatprep.subr.mxu0 0.0
      %351 = vmatpush2.msra.mxu0 0.0
      %352 = vmatprep.subr.mxu0 0.0
      %353 = vmatpush2.msra.mxu0 0.0
      %354 = vmatprep.subr.mxu0 0.0
      %355 = vmatpush2.msra.mxu0 0.0
      %356 = vmatprep.subr.mxu0 0.0
      %357 = vmatpush2.msra.mxu0 0.0
      %358 = vmatprep.subr.mxu0 0.0
      %359 = vmatpush2.msra.mxu0 0.0
      %360 = vmatprep.mubr.f32.mxu0 0.0
      %361 = vmatmul.mubr.f32.gmra.mxu0 %v288
      %v362 = vpop.f32.mrf.mxu0
      %v363 = vadd.f32 %v274, %v362
      %v364 = vpop.f32.mrf.mxu0
      %v365 = vadd.f32 %v274, %v364
      %366 = vmatprep.mubr.f32.mxu0 0.0
      %367 = vmatmul.mubr.f32.gmra.mxu0 %v291
      %v368 = vpop.f32.mrf.mxu0
      %v369 = vadd.f32 %v279, %v368
      %v370 = vpop.f32.mrf.mxu0
      %v371 = vadd.f32 %v279, %v370
      %372 = vmatprep.mubr.f32.mxu0 0.0
      %373 = vmatmul.mubr.f32.gmra.mxu0 %v294
      %v374 = vpop.f32.mrf.mxu0
      %v375 = vadd.f32 %v284, %v374
      %v376 = vpop.f32.mrf.mxu0
      %v377 = vadd.f32 %v284, %v376
      %378 = vdwg.mxu0
      %379 = vst [vmem:[%s249] sm:$0xff] %v363
      %380 = vst [vmem:[%s249 + $0x8] sm:$0xff] %v365
      %v381 = vlaneseq
      %v382 = vshrl.u32 %v381, 7
      %v383 = vrot.slane %v363, 4
      %v384 = vmax.f32 %v363, %v383
      %v385 = vrot.slane %v384, 2
      %v386 = vmax.f32 %v384, %v385
      %v387 = vrot.slane %v386, 1
      %v388 = vmax.f32 %v386, %v387
      %v389 = vrot.slane %v365, 4
      %v390 = vmax.f32 %v365, %v389
      %v391 = vrot.slane %v390, 2
      %v392 = vmax.f32 %v390, %v391
      %v393 = vrot.slane %v392, 1
      %v394 = vmax.f32 %v392, %v393
      %vm395 = vcmp.eq.f32.partialorder %v363, %v388
      %vm396 = vcmp.eq.f32.partialorder %v365, %v394
      %v397 = vsel %vm395, %v382, 8
      %v398 = vsel %vm396, %v382, 8
      %v399 = vrot.slane %v397, 4
      %vm400 = vcmp.lt.s32.totalorder %v397, %v399
      %v401 = vsel %vm400, %v397, %v399
      %v402 = vrot.slane %v401, 2
      %vm403 = vcmp.lt.s32.totalorder %v401, %v402
      %v404 = vsel %vm403, %v401, %v402
      %v405 = vrot.slane %v404, 1
      %vm406 = vcmp.lt.s32.totalorder %v404, %v405
      %v407 = vsel %vm406, %v404, %v405
      %v408 = vrot.slane %v398, 4
      %vm409 = vcmp.lt.s32.totalorder %v398, %v408
      %v410 = vsel %vm409, %v398, %v408
      %v411 = vrot.slane %v410, 2
      %vm412 = vcmp.lt.s32.totalorder %v410, %v411
      %v413 = vsel %vm412, %v410, %v411
      %v414 = vrot.slane %v413, 1
      %vm415 = vcmp.lt.s32.totalorder %v413, %v414
      %v416 = vsel %vm415, %v413, %v414
      %vm417 = vcmp.eq.s32.totalorder %v382, %v407
      %vm418 = vcmp.eq.s32.totalorder %v382, %v416
      %v419 = vsel %vm417, 1, 0
      %v420 = vsel %vm418, 1, 0
      %v421 = vcvt.s32.f32 %v419
      %v422 = vcvt.s32.f32 %v420
      %v423 = vmul.f32 %v421, %v369
      %v424 = vmul.f32 %v422, %v371
      %v425 = vrot.slane %v423, 4
      %v426 = vadd.f32 %v423, %v425
      %v427 = vrot.slane %v426, 2
      %v428 = vadd.f32 %v426, %v427
      %v429 = vrot.slane %v428, 1
      %v430 = vadd.f32 %v428, %v429
      %v431 = vrot.slane %v424, 4
      %v432 = vadd.f32 %v424, %v431
      %v433 = vrot.slane %v432, 2
      %v434 = vadd.f32 %v432, %v433
      %v435 = vrot.slane %v434, 1
      %v436 = vadd.f32 %v434, %v435
      %v437 = vmul.f32 %v421, %v375
      %v438 = vmul.f32 %v422, %v377
      %v439 = vrot.slane %v437, 4
      %v440 = vadd.f32 %v437, %v439
      %v441 = vrot.slane %v440, 2
      %v442 = vadd.f32 %v440, %v441
      %v443 = vrot.slane %v442, 1
      %v444 = vadd.f32 %v442, %v443
      %v445 = vrot.slane %v438, 4
      %v446 = vadd.f32 %v438, %v445
      %v447 = vrot.slane %v446, 2
      %v448 = vadd.f32 %v446, %v447
      %v449 = vrot.slane %v448, 1
      %v450 = vadd.f32 %v448, %v449
      %v451 = vmul.f32 %v444, 1.442695
      %v452 = vpow.pop %v451
      %v453 = vmul.f32 %v450, 1.442695
      %v454 = vpow.pop %v453
      %v457 = vcombine.low %v452, %v454
      %v459 = vunpack.c.l.s4 1966171168
      %v460 = vunpack.c.0.s8 %v459
      %v461 = vlaneseq
      %v462 = vshrl.u32 %v461, 7
      %v463 = vsub.s32 %v460, %v462
      %v464 = vrot.slane %v457, %v463
      %v466 = vunpack.c.l.s4 1966171168
      %v467 = vunpack.c.0.s8 %v466
      %v468 = vlaneseq
      %v469 = vshrl.u32 %v468, 7
      %v470 = vsub.s32 %v467, %v469
      %v471 = vrot.slane %v464, %v470
      %v473 = vlaneseq
      %vm474 = vcmp.ge.s32.totalorder %v473, 0
      %vm475 = vcmp.lt.s32.totalorder %v473, 256
      %vm476 = vmand %vm474, %vm475
      %477 = vst.msk [vmem:[%s259] ss:$2 sm:$0x3] %vm476, %v471
      %v480 = vcombine.low %v430, %v436
      %v482 = vunpack.c.l.s4 1966171168
      %v483 = vunpack.c.0.s8 %v482
      %v484 = vlaneseq
      %v485 = vshrl.u32 %v484, 7
      %v486 = vsub.s32 %v483, %v485
      %v487 = vrot.slane %v480, %v486
      %v489 = vunpack.c.l.s4 1966171168
      %v490 = vunpack.c.0.s8 %v489
      %v491 = vlaneseq
      %v492 = vshrl.u32 %v491, 7
      %v493 = vsub.s32 %v490, %v492
      %v494 = vrot.slane %v487, %v493
      %s496 = scalar_lea.vmem %s259, 1
      %497 = vst.msk [vmem:[%s496] ss:$2 sm:$0x3] %vm476, %v494
      %s498 = smul.u32 2, %s21
      %p499 = scmp.lt.s32.totalorder %s20, 1
      %s500 = scalar_select %p499, %s20, 1
      %p501 = scmp.lt.s32.totalorder %s498, 1
      %s502 = scalar_select %p501, %s498, 1
      %s503 = smul.addr %s500, 2
      %s504 = sadd.s32 %s502, %s503
      %s505 = smul.addr %s504, 8
      %s506 = scalar_lea.vmem %s3, %s505
      %s507 = smul.u32 2, %s21
      %p508 = scmp.lt.s32.totalorder %s20, 1
      %s509 = scalar_select %p508, %s20, 1
      %p510 = scmp.lt.s32.totalorder %s507, 1
      %s511 = scalar_select %p510, %s507, 1
      %s512 = smul.addr %s509, 2
      %s513 = sadd.s32 %s511, %s512
      %s514 = smul.addr %s513, 2
      %s515 = scalar_lea.vmem %s4, %s514
      // Predicated region
      $region33: #{depth_encode_forward.1} parent=31 // pred_check
        %p516 = pneg %p118
      $region34: #{depth_encode_forward.1} parent=31 // pred_check_branch
        %518 = sbr.rel (%p516) target = $region36
      $region35: #{depth_encode_forward.1} parent=31 // pred_region
        %s519 = smul.u32 2, %s21
      $region36: #{depth_encode_forward.1} parent=31 // pred_fallthru
        _
      // Predicated region
      $region37: #{depth_encode_forward.1} parent=31 // pred_check
        %p520 = pneg %p146
      $region38: #{depth_encode_forward.1} parent=31 // pred_check_branch
        %522 = sbr.rel (%p520) target = $region40
      $region39: #{depth_encode_forward.1} parent=31 // pred_region
        %s523 = smul.u32 2, %s21
      $region40: #{depth_encode_forward.1} parent=31 // pred_fallthru
        _
    $region32: #{depth_encode_forward.1} parent=5 // pred_fallthru
      _
    %p524 = scmp.le.s32.totalorder 2, %s11
    // Predicated region
    $region41: #{depth_encode_forward.1} parent=5 // pred_check
      %p525 = pneg %p524
    $region42: #{depth_encode_forward.1} parent=5 // pred_check_branch
      %527 = sbr.rel (%p525) target = $region44
    $region43: #{depth_encode_forward.1} parent=5 // pred_region
      %s528 = ssub.s32 %s11, 2
      // Predicated region
      $region45: #{depth_encode_forward.1} parent=43 // pred_check
        %p529 = pneg %p124
      $region46: #{depth_encode_forward.1} parent=43 // pred_check_branch
        %531 = sbr.rel (%p529) target = $region48
      $region47: #{depth_encode_forward.1} parent=43 // pred_region
        %s532 = smul.u32 2, %s23
        %p533 = scmp.lt.s32.totalorder %s22, 1
        %s534 = scalar_select %p533, %s22, 1
        %p535 = scmp.lt.s32.totalorder %s532, 1
        %s536 = scalar_select %p535, %s532, 1
        %s537 = smul.addr %s534, 2
        %s538 = sadd.s32 %s536, %s537
        %s539 = smul.addr %s538, 8
        %s540 = scalar_lea.vmem %s3, %s539
      $region48: #{depth_encode_forward.1} parent=43 // pred_fallthru
        _
      // Predicated region
      $region49: #{depth_encode_forward.1} parent=43 // pred_check
        %p541 = pneg %p152
      $region50: #{depth_encode_forward.1} parent=43 // pred_check_branch
        %543 = sbr.rel (%p541) target = $region52
      $region51: #{depth_encode_forward.1} parent=43 // pred_region
        %s544 = smul.u32 2, %s23
        %p545 = scmp.lt.s32.totalorder %s22, 1
        %s546 = scalar_select %p545, %s22, 1
        %p547 = scmp.lt.s32.totalorder %s544, 1
        %s548 = scalar_select %p547, %s544, 1
        %s549 = smul.addr %s546, 2
        %s550 = sadd.s32 %s548, %s549
        %s551 = smul.addr %s550, 2
        %s552 = scalar_lea.vmem %s4, %s551
      $region52: #{depth_encode_forward.1} parent=43 // pred_fallthru
        _
    $region44: #{depth_encode_forward.1} parent=5 // pred_fallthru
      _
  $region6: #{depth_encode_forward.1} parent=0 // loop_footer
    %s15 = sadd.s32 1, %s11
  $region7: #{depth_encode_forward.1} parent=0 // loop_footer_branch
    %10 = sbr.rel target = $region3
  $region8: #{depth_encode_forward.1} parent=0 // loop_exit
    _

</llo_original>
